<compile_context>
chip_gen: v7x
topology: tpu7x:2x2x1
jax: 0.10.0
libtpu: 0.0.40
codegen_flags: <defaults>
</compile_context>

<pallas_src>
import functools

import jax
import jax.numpy as jnp
from jax import lax
from jax.experimental import pallas as pl
from jax.experimental.pallas import tpu as pltpu


PANEL_ROWS = 256        # rows of x processed per inner-loop iteration (lane dim of h)
MAX_TILE_ROWS = 2048    # rows of x DMA'd per grid step


# ----------------------------------------------------------------------------
# Pallas kernel: fused MLP, feature-major (h = W @ x^T), panel loop, lane-dense stores
# ----------------------------------------------------------------------------
def _mlp_kernel(panel, x_ref, *refs):
    """One row-tile of the fused MLP.

    x_ref : (tile_rows, D)           input rows, original dtype (cast per panel)
    refs  : w0 (H, D) f32
            [w_h (L-1, H, H) f32]    only present when n_layers > 1
            b_all (L, H, 1) f32      hidden biases (layer 0 first)
            w_out (H, 1) f32
            b_out (1, 1) f32
            o_ref (n_panels, panel)  f32 output: one lane-dense row per panel
    """
    o_ref = refs[-1]
    params = refs[:-1]
    if len(params) == 5:
        w0_ref, w_h_ref, b_ref, w_out_ref, b_out_ref = params
    else:
        w0_ref, b_ref, w_out_ref, b_out_ref = params
        w_h_ref = None

    n_hidden = b_ref.shape[0]
    n_panels = x_ref.shape[0] // panel   # static by construction

    def panel_body(p, carry):
        r0 = pl.multiple_of(p * panel, panel)
        x = x_ref[pl.ds(r0, panel), :].astype(jnp.float32)          # (panel, D)

        # Layer 0, feature-major: h = relu(W0 @ x^T + b0).
        # A . B^T (trans_b) is the MXU-native contraction (== pl.dot(trans_b=True)),
        # so no relayout/transpose of the x panel is materialised.
        h = lax.dot_general(w0_ref[...], x, (((1,), (1,)), ((), ())),
                            preferred_element_type=jnp.float32)     # (H, panel)
        h = jnp.maximum(h + b_ref[0], 0.0)                          # bias + ReLU (VPU)

        for l in range(1, n_hidden):                                # static unrolled layers
            h = jnp.dot(w_h_ref[l - 1], h,
                        preferred_element_type=jnp.float32) + b_ref[l]
            h = jnp.maximum(h, 0.0)

        # Final Linear(H, 1) off the MXU: VPU multiply + sublane (XLU) reduce gives a
        # lane-dense (1, panel) row -> unmasked full-lane store to this panel's row.
        out = jnp.sum(h * w_out_ref[...], axis=0, keepdims=True) + b_out_ref[...]
        o_ref[pl.ds(p, 1), :] = out.astype(o_ref.dtype)
        return carry

    # fori_loop (not a static Python for / not unrolled) bounds the per-panel vreg live
    # set; each iteration carries enough MXU/XLU work to hide the loop overhead.
    lax.fori_loop(0, n_panels, panel_body, 0, unroll=False)


def _choose_tile(n_rows, panel=PANEL_ROWS, max_tile=MAX_TILE_ROWS):
    """Pick (tile_rows, panel). Big tiles amortise per-step overhead; aim for >=2 tiles so
    both v7x TensorCores get work. Never exceeds n_rows (only standard partial last block)."""
    if n_rows < panel:
        return n_rows, n_rows                       # single tile == single panel
    half = -(-n_rows // 2)                          # cdiv(n_rows, 2)
    tile = -(-half // panel) * panel                # round up to a panel multiple
    tile = max(panel, min(max_tile, tile))
    return tile, panel


def _pack_params(params):
    """Pack the PyTorch-style flat list into a layer-count-independent set of arrays."""
    n_hidden = len(params) // 2 - 1
    assert n_hidden >= 1
    w0 = params[0].astype(jnp.float32)                                        # (H, D)
    b_all = jnp.stack([params[2 * i + 1].astype(jnp.float32)
                       for i in range(n_hidden)], axis=0)                     # (L, H, 1)
    w_out = params[-2].astype(jnp.float32)                                    # (H, 1)
    b_out = params[-1].astype(jnp.float32)                                    # (1, 1)
    packed = [w0]
    if n_hidden > 1:
        w_h = jnp.stack([params[2 * i].astype(jnp.float32)
                         for i in range(1, n_hidden)], axis=0)                # (L-1, H, H)
        packed.append(w_h)
    packed += [b_all, w_out, b_out]
    return packed


def factor_reward_model_forward(x, params, *, max_tile_rows=MAX_TILE_ROWS):
    """Run the fused MLP kernel on x of shape (N, D) -> rewards of shape (N,) in f32."""
    N, D = x.shape
    tile_rows, panel = _choose_tile(N, max_tile=max_tile_rows)
    n_panels = tile_rows // panel
    n_tiles = -(-N // tile_rows)

    call_params = _pack_params(params)

    in_specs = [pl.BlockSpec((tile_rows, D), lambda i: (i, 0))]
    for p in call_params:
        # constant block index -> weights stay resident in VMEM across the whole grid
        in_specs.append(pl.BlockSpec(p.shape, lambda i, _nd=p.ndim: (0,) * _nd))

    # Per grid step: one (n_panels, panel) block; each panel writes a lane-dense row.
    out_specs = pl.BlockSpec((None, n_panels, panel), lambda i: (i, 0, 0))
    out_shape = jax.ShapeDtypeStruct((n_tiles, n_panels, panel), jnp.float32)

    out = pl.pallas_call(
        functools.partial(_mlp_kernel, panel),
        out_shape=out_shape,
        grid_spec=pltpu.PrefetchScalarGridSpec(
            num_scalar_prefetch=0,
            grid=(n_tiles,),
            in_specs=in_specs,
            out_specs=out_specs,
        ),
        compiler_params=pltpu.CompilerParams(
            dimension_semantics=("parallel",),   # row tiles shard across v7x TensorCores
        ),
    )(x, *call_params)

    # Flatten (tiles, panels, panel) -> global row order; drop the tail of the last tile.
    return out.reshape(-1)[:N]


# ----------------------------------------------------------------------------
# Parameter construction (deterministic, PyTorch-Linear-like uniform init)
# Weights in PyTorch (out, in) layout; biases as (out, 1) columns; final Linear(H, 1)
# weight stored as an (H, 1) column.
# ----------------------------------------------------------------------------
def make_factor_reward_model_params(key, input_dim, hidden_dim, n_layers):
    params = []
    dims = [input_dim] + [hidden_dim] * n_layers
    for i in range(n_layers):
        key, kw, kb = jax.random.split(key, 3)
        bound = 1.0 / float(dims[i] ** 0.5)
        w = jax.random.uniform(kw, (dims[i + 1], dims[i]), jnp.float32, -bound, bound)
        b = jax.random.uniform(kb, (dims[i + 1], 1), jnp.float32, -bound, bound)
        params += [w, b]
    key, kw, kb = jax.random.split(key, 3)
    bound = 1.0 / float(hidden_dim ** 0.5)
    w_out = jax.random.uniform(kw, (hidden_dim, 1), jnp.float32, -bound, bound)
    b_out = jax.random.uniform(kb, (1, 1), jnp.float32, -bound, bound)
    params += [w_out, b_out]
    return params


# ----------------------------------------------------------------------------
# FactorRewardDecomposer.forward  (only_s path: reward_model on raw states)
# ----------------------------------------------------------------------------
def factor_reward_decomposer_forward(states, params, *, next_states=None,
                                     use_next_state=False, return_tensor_scores=False):
    # states: (b, n_agents, t, obs_dim) in any float dtype (bf16 states halve the x DMA)
    src = next_states if (use_next_state and next_states is not None) else states
    b, na, t, d = src.shape
    flat = src.reshape(b * na * t, d)            # no host-side f32 cast; the kernel casts
    rewards = factor_reward_model_forward(flat, params).reshape(b, na, t, 1)
    if return_tensor_scores:
        return rewards, src.astype(jnp.float32)  # tensor_scores as in the PyTorch module
    return rewards


# ----------------------------------------------------------------------------
# Pure-JAX reference for correctness checking
# ----------------------------------------------------------------------------
def _reference_mlp(x, params):
    n_hidden = len(params) // 2 - 1
    h = x.astype(jnp.float32)
    for i in range(n_hidden):
        w, b = params[2 * i], params[2 * i + 1]          # (out, in), (out, 1)
        h = jnp.maximum(h @ w.T + b[:, 0], 0.0)
    w_out, b_out = params[-2], params[-1]                # (H, 1), (1, 1)
    return h @ w_out + b_out[0, 0]                       # (N, 1)


if __name__ == "__main__":
    # Small shapes implied by forward(): (batch, n_agents, timesteps, obs_dim)
    B, NA, T, D = 2, 4, 8, 32
    HIDDEN = 32
    N_LAYERS = 2  # args.factor_reward_model_layers

    key = jax.random.PRNGKey(0)
    k_states, k_params, k_states2, k_states3, k_params1 = jax.random.split(key, 5)

    states = jax.random.normal(k_states, (B, NA, T, D), jnp.float32)
    params = make_factor_reward_model_params(k_params, D, HIDDEN, N_LAYERS)

    ref = _reference_mlp(states.reshape(B * NA * T, D), params).reshape(B, NA, T, 1)

    # f32 kernel (default): tight parity with the f32 PyTorch module
    rewards = jax.block_until_ready(factor_reward_decomposer_forward(states, params))
    assert rewards.shape == (B, NA, T, 1), rewards.shape
    assert jnp.allclose(rewards, ref, atol=1e-4, rtol=1e-4), "f32 kernel mismatch vs reference"

    # Row count that is NOT a tile/panel multiple exercises the partial-block path (no pad)
    states_odd = jax.random.normal(k_states2, (3, 3, 7, D), jnp.float32)
    rewards_odd = jax.block_until_ready(factor_reward_decomposer_forward(states_odd, params))
    ref_odd = _reference_mlp(states_odd.reshape(3 * 3 * 7, D), params).reshape(3, 3, 7, 1)
    assert jnp.allclose(rewards_odd, ref_odd, atol=1e-4, rtol=1e-4), "partial-block mismatch"

    # Larger ragged N exercises multiple row tiles + the in-kernel panel loop
    states_big = jax.random.normal(k_states3, (8, NA, 100, D), jnp.float32)
    rewards_big = jax.block_until_ready(factor_reward_decomposer_forward(states_big, params))
    ref_big = _reference_mlp(states_big.reshape(8 * NA * 100, D), params).reshape(8, NA, 100, 1)
    assert jnp.allclose(rewards_big, ref_big, atol=1e-4, rtol=1e-4), "multi-tile mismatch"

    # bf16 states: halves the x HBM stream (the v5e recommendation); computed in f32 in-kernel
    states_bf16 = states.astype(jnp.bfloat16)
    rewards_bf16 = jax.block_until_ready(factor_reward_decomposer_forward(states_bf16, params))
    ref_bf16 = _reference_mlp(states_bf16.reshape(B * NA * T, D), params).reshape(B, NA, T, 1)
    assert jnp.allclose(rewards_bf16, ref_bf16, atol=1e-4, rtol=1e-4), "bf16-input mismatch"

    # n_layers = 1 exercises the no-hidden-stack parameter packing path
    params1 = make_factor_reward_model_params(k_params1, D, HIDDEN, 1)
    rewards1 = jax.block_until_ready(factor_reward_decomposer_forward(states, params1))
    ref1 = _reference_mlp(states.reshape(B * NA * T, D), params1).reshape(B, NA, T, 1)
    assert jnp.allclose(rewards1, ref1, atol=1e-4, rtol=1e-4), "n_layers=1 mismatch"

    # TODO(synk): LLM-generated `evaluation_func` (exec of arbitrary Python on numpy obs),
    # file-based rd_function loading, and the hetero_tag dual-model scenario path have no
    # Pallas equivalent; the only_s=True path (reward_model directly on states) is implemented.
    print("KERNEL_OK")
</pallas_src>

<mosaic_0001>
module attributes {stable_mosaic.version = 11 : i64} {
  func.func @_mlp_kernel(%arg0: i32, %arg1: memref<64x32xf32, #tpu.memory_space<vmem>>, %arg2: memref<32x32xf32, #tpu.memory_space<vmem>>, %arg3: memref<1x32x32xf32, #tpu.memory_space<vmem>>, %arg4: memref<2x32x1xf32, #tpu.memory_space<vmem>>, %arg5: memref<32x1xf32, #tpu.memory_space<vmem>>, %arg6: memref<1x1xf32, #tpu.memory_space<vmem>>, %arg7: memref<1x1x64xf32, #tpu.memory_space<vmem>>) attributes {dimension_semantics = [#tpu.dimension_semantics<parallel>], iteration_bounds = array<i64: 1>, scalar_prefetch = 0 : i64, scratch_operands = 0 : i64, tpu.core_type = #tpu.core_type<tc>, window_params = [{transform_indices = @transform_0, window_bounds = array<i64: 64, 32>}, {pipeline_mode = #tpu.pipeline_mode<synchronous>, transform_indices = @transform_1, window_bounds = array<i64: 32, 32>}, {pipeline_mode = #tpu.pipeline_mode<synchronous>, transform_indices = @transform_2, window_bounds = array<i64: 1, 32, 32>}, {pipeline_mode = #tpu.pipeline_mode<synchronous>, transform_indices = @transform_3, window_bounds = array<i64: 2, 32, 1>}, {pipeline_mode = #tpu.pipeline_mode<synchronous>, transform_indices = @transform_4, window_bounds = array<i64: 32, 1>}, {pipeline_mode = #tpu.pipeline_mode<synchronous>, transform_indices = @transform_5, window_bounds = array<i64: 1, 1>}, {transform_indices = @transform_6, window_bounds = array<i64: 1, 1, 64>}]} {
    %c0_i32 = arith.constant 0 : i32
    %c64_i32 = arith.constant 64 : i32
    %0 = arith.muli %c0_i32, %c64_i32 : i32
    %1 = tpu.assume_multiple %0, 64 : i32
    %2 = arith.index_cast %1 : i32 to index
    %c0 = arith.constant 0 : index
    %3 = vector.load %arg1[%2, %c0] : memref<64x32xf32, #tpu.memory_space<vmem>>, vector<64x32xf32>
    %c0_0 = arith.constant 0 : index
    %c0_1 = arith.constant 0 : index
    %4 = vector.load %arg2[%c0_0, %c0_1] : memref<32x32xf32, #tpu.memory_space<vmem>>, vector<32x32xf32>
    %cst = arith.constant dense<0.000000e+00> : vector<32x64xf32>
    %5 = tpu.matmul %4, %3, %cst {dimension_numbers = #tpu.dot_dimension_numbers<[1], [1], [0], [0], [0, 0, 1, 0], [], []>} : vector<32x32xf32>, vector<64x32xf32>, vector<32x64xf32> -> vector<32x64xf32>
    %c0_2 = arith.constant 0 : index
    %c0_3 = arith.constant 0 : index
    %c0_4 = arith.constant 0 : index
    %6 = vector.load %arg4[%c0_2, %c0_3, %c0_4] : memref<2x32x1xf32, #tpu.memory_space<vmem>>, vector<1x32x1xf32>
    %7 = vector.shape_cast %6 : vector<1x32x1xf32> to vector<32x1xf32>
    %8 = vector.broadcast %7 : vector<32x1xf32> to vector<32x64xf32>
    %9 = arith.addf %5, %8 : vector<32x64xf32>
    %cst_5 = arith.constant 0.000000e+00 : f32
    %10 = vector.broadcast %cst_5 : f32 to vector<32x64xf32>
    %11 = arith.maximumf %9, %10 : vector<32x64xf32>
    %c0_6 = arith.constant 0 : index
    %c0_7 = arith.constant 0 : index
    %c0_8 = arith.constant 0 : index
    %12 = vector.load %arg3[%c0_6, %c0_7, %c0_8] : memref<1x32x32xf32, #tpu.memory_space<vmem>>, vector<1x32x32xf32>
    %13 = vector.shape_cast %12 : vector<1x32x32xf32> to vector<32x32xf32>
    %cst_9 = arith.constant dense<0.000000e+00> : vector<32x64xf32>
    %14 = tpu.matmul %13, %11, %cst_9 {dimension_numbers = #tpu.dot_dimension_numbers<[1], [0], [0], [1], [0, 0, 1, 1], [], []>} : vector<32x32xf32>, vector<32x64xf32>, vector<32x64xf32> -> vector<32x64xf32>
    %c1 = arith.constant 1 : index
    %c0_10 = arith.constant 0 : index
    %c0_11 = arith.constant 0 : index
    %15 = vector.load %arg4[%c1, %c0_10, %c0_11] : memref<2x32x1xf32, #tpu.memory_space<vmem>>, vector<1x32x1xf32>
    %16 = vector.shape_cast %15 : vector<1x32x1xf32> to vector<32x1xf32>
    %17 = vector.broadcast %16 : vector<32x1xf32> to vector<32x64xf32>
    %18 = arith.addf %14, %17 : vector<32x64xf32>
    %cst_12 = arith.constant 0.000000e+00 : f32
    %19 = vector.broadcast %cst_12 : f32 to vector<32x64xf32>
    %20 = arith.maximumf %18, %19 : vector<32x64xf32>
    %c0_13 = arith.constant 0 : index
    %c0_14 = arith.constant 0 : index
    %21 = vector.load %arg5[%c0_13, %c0_14] : memref<32x1xf32, #tpu.memory_space<vmem>>, vector<32x1xf32>
    %22 = vector.broadcast %21 : vector<32x1xf32> to vector<32x64xf32>
    %23 = arith.mulf %20, %22 : vector<32x64xf32>
    %cst_15 = arith.constant dense<0.000000e+00> : vector<64xf32>
    %24 = vector.multi_reduction <add>, %23, %cst_15 [0] : vector<32x64xf32> to vector<64xf32>
    %25 = vector.shape_cast %24 : vector<64xf32> to vector<1x64xf32>
    %c0_16 = arith.constant 0 : index
    %c0_17 = arith.constant 0 : index
    %26 = vector.load %arg6[%c0_16, %c0_17] : memref<1x1xf32, #tpu.memory_space<vmem>>, vector<1x1xf32>
    %27 = vector.broadcast %26 : vector<1x1xf32> to vector<1x64xf32>
    %28 = arith.addf %25, %27 : vector<1x64xf32>
    %c0_18 = arith.constant 0 : index
    %29 = arith.index_cast %c0_i32 : i32 to index
    %c0_19 = arith.constant 0 : index
    %30 = vector.load %arg7[%c0_18, %29, %c0_19] : memref<1x1x64xf32, #tpu.memory_space<vmem>>, vector<1x1x64xf32>
    %31 = vector.shape_cast %30 : vector<1x1x64xf32> to vector<1x64xf32>
    %32 = vector.shape_cast %28 : vector<1x64xf32> to vector<1x1x64xf32>
    tpu.vector_store %arg7[%c0_18, %29, %c0_19], %32 {strides = array<i32>} : memref<1x1x64xf32, #tpu.memory_space<vmem>>, vector<1x1x64xf32>,
    %c1_i32 = arith.constant 1 : i32
    return
  }
  func.func @transform_0(%arg0: i32) -> (i32, i32) {
    %c0_i32 = arith.constant 0 : i32
    %c0_i32_0 = arith.constant 0 : i32
    return %arg0, %c0_i32 : i32, i32
  }
  func.func @transform_1(%arg0: i32) -> (i32, i32) {
    %c0_i32 = arith.constant 0 : i32
    %c0_i32_0 = arith.constant 0 : i32
    %c0_i32_1 = arith.constant 0 : i32
    return %c0_i32, %c0_i32_0 : i32, i32
  }
  func.func @transform_2(%arg0: i32) -> (i32, i32, i32) {
    %c0_i32 = arith.constant 0 : i32
    %c0_i32_0 = arith.constant 0 : i32
    %c0_i32_1 = arith.constant 0 : i32
    %c0_i32_2 = arith.constant 0 : i32
    return %c0_i32, %c0_i32_0, %c0_i32_1 : i32, i32, i32
  }
  func.func @transform_3(%arg0: i32) -> (i32, i32, i32) {
    %c0_i32 = arith.constant 0 : i32
    %c0_i32_0 = arith.constant 0 : i32
    %c0_i32_1 = arith.constant 0 : i32
    %c0_i32_2 = arith.constant 0 : i32
    return %c0_i32, %c0_i32_0, %c0_i32_1 : i32, i32, i32
  }
  func.func @transform_4(%arg0: i32) -> (i32, i32) {
    %c0_i32 = arith.constant 0 : i32
    %c0_i32_0 = arith.constant 0 : i32
    %c0_i32_1 = arith.constant 0 : i32
    return %c0_i32, %c0_i32_0 : i32, i32
  }
  func.func @transform_5(%arg0: i32) -> (i32, i32) {
    %c0_i32 = arith.constant 0 : i32
    %c0_i32_0 = arith.constant 0 : i32
    %c0_i32_1 = arith.constant 0 : i32
    return %c0_i32, %c0_i32_0 : i32, i32
  }
  func.func @transform_6(%arg0: i32) -> (i32, i32, i32) {
    %c0_i32 = arith.constant 0 : i32
    %c0_i32_0 = arith.constant 0 : i32
    %c0_i32_1 = arith.constant 0 : i32
    return %arg0, %c0_i32, %c0_i32_0 : i32, i32, i32
  }
}

</mosaic_0001>

<llo_original>
// kernel: tpu_custom_call.1
$region0: #{tpu_custom_call.1}
  #allocation0 [shape = 'u32[]', space=smem, size = 0x4, offset = 0x4, fixed_abs, tag = 'smem constant byte address 0x4 - core index']
  #allocation1 [shape = 'u32[144,128]{1,0:T(1,128)}', space=vmem, size = 0x12000, scoped, tag = 'internal scratch']
  #allocation2 [shape = 'f32[1,1]{1,0:T(1,128)S(1)}', space=vmem, size = 0x200, scoped, tag = 'scoped memory for tpu_custom_call.1']
  %s0 = inlined_call_operand.vmem [shape: f32[64,32], index: 0, kind: input, shape index: {}]
  %s1 = inlined_call_operand.vmem [shape: f32[32,32], index: 1, kind: input, shape index: {}]
  %s2 = inlined_call_operand.vmem [shape: f32[1,32,32], index: 2, kind: input, shape index: {}]
  %s3 = inlined_call_operand.vmem [shape: f32[2,32,1], index: 3, kind: input, shape index: {}]
  %s4 = inlined_call_operand.vmem [shape: f32[32,1], index: 4, kind: input, shape index: {}]
  %s5 = inlined_call_operand.<no memory space> [shape: f32[1,1], index: 5, kind: input, shape index: {}]
  %s6 = inlined_call_operand.hbm [shape: f32[1,1,64], index: 6, kind: output, shape index: {}]
  %s7 = sld [smem:[#allocation0]]
  $region34: #{tpu_custom_call.1} parent=0
    _
  %s9 = ssub.s32 1, %s7
  %s10 = scalar_select 0, %s9, %s7
  %v11 = vstv %s5
  %12 = vst [vmem:[#allocation2] sm:$0x1] %v11
  $region1: #{tpu_custom_call.1} parent=0
    #allocation3 [shape = 'u8[512]{0}', space=vmem, size = 0x400, scoped, tag = 'output window, operand 0, single buffered']
    #allocation4 [shape = 's32[1]{0}', space=sflag, size = 0x4, scoped, tag = 'scoped memory for tpu_custom_call.1']
    %13 = vsyncpa [#allocation4], 0
    // Predicated region
    $region2: #{tpu_custom_call.1} parent=1 // pred_check
      _
    $region3: #{tpu_custom_call.1} parent=1 // pred_check_branch
      %15 = sbr.rel (0) target = $region5
    $region4: #{tpu_custom_call.1} parent=1 // pred_region
      _
    $region5: #{tpu_custom_call.1} parent=1 // pred_fallthru
      _
    // Predicated region
    $region6: #{tpu_custom_call.1} parent=1 // pred_check
      _
    $region7: #{tpu_custom_call.1} parent=1 // pred_check_branch
      %17 = sbr.rel (0) target = $region9
    $region8: #{tpu_custom_call.1} parent=1 // pred_region
      _
    $region9: #{tpu_custom_call.1} parent=1 // pred_fallthru
      _
    // Predicated region
    $region10: #{tpu_custom_call.1} parent=1 // pred_check
      _
    $region11: #{tpu_custom_call.1} parent=1 // pred_check_branch
      %19 = sbr.rel (0) target = $region13
    $region12: #{tpu_custom_call.1} parent=1 // pred_region
      _
    $region13: #{tpu_custom_call.1} parent=1 // pred_fallthru
      _
    // Predicated region
    $region14: #{tpu_custom_call.1} parent=1 // pred_check
      _
    $region15: #{tpu_custom_call.1} parent=1 // pred_check_branch
      %21 = sbr.rel (0) target = $region17
    $region16: #{tpu_custom_call.1} parent=1 // pred_region
      _
    $region17: #{tpu_custom_call.1} parent=1 // pred_fallthru
      _
    // Predicated region
    $region18: #{tpu_custom_call.1} parent=1 // pred_check
      _
    $region19: #{tpu_custom_call.1} parent=1 // pred_check_branch
      %23 = sbr.rel (0) target = $region21
    $region20: #{tpu_custom_call.1} parent=1 // pred_region
      _
    $region21: #{tpu_custom_call.1} parent=1 // pred_fallthru
      _
    // Predicated region
    $region22: #{tpu_custom_call.1} parent=1 // pred_check
      _
    $region23: #{tpu_custom_call.1} parent=1 // pred_check_branch
      %25 = sbr.rel (0) target = $region25
    $region24: #{tpu_custom_call.1} parent=1 // pred_region
      _
    $region25: #{tpu_custom_call.1} parent=1 // pred_fallthru
      _
    %v26 = vld [vmem:[%s0] sm:$0xff]
    %v27 = vld [vmem:[%s0 + $0x8] sm:$0xff]
    %v28 = vld [vmem:[%s0 + $0x10] sm:$0xff]
    %v29 = vld [vmem:[%s0 + $0x18] sm:$0xff]
    %v30 = vld [vmem:[%s0 + $0x20] sm:$0xff]
    %v31 = vld [vmem:[%s0 + $0x28] sm:$0xff]
    %v32 = vld [vmem:[%s0 + $0x30] sm:$0xff]
    %v33 = vld [vmem:[%s0 + $0x38] sm:$0xff]
    %v34 = vld [vmem:[%s1] sm:$0xff]
    %v35 = vld [vmem:[%s1 + $0x8] sm:$0xff]
    %v36 = vld [vmem:[%s1 + $0x10] sm:$0xff]
    %v37 = vld [vmem:[%s1 + $0x18] sm:$0xff]
    %v38 = vld [vmem:[%s3] sm:$0xff]
    %v39 = vld [vmem:[%s3 + $0x8] sm:$0xff]
    %v40 = vld [vmem:[%s3 + $0x10] sm:$0xff]
    %v41 = vld [vmem:[%s3 + $0x18] sm:$0xff]
    %43 = vset.pattern.permute.xlu0 0
    %44 = vperm.xlu0 %43, %v38
    %v45 = vpop.permute.xlu0 %44
    %48 = vset.pattern.permute.xlu0 0
    %49 = vperm.xlu0 %48, %v39
    %v50 = vpop.permute.xlu0 %49
    %53 = vset.pattern.permute.xlu0 0
    %54 = vperm.xlu0 %53, %v40
    %v55 = vpop.permute.xlu0 %54
    %58 = vset.pattern.permute.xlu0 0
    %59 = vperm.xlu0 %58, %v41
    %v60 = vpop.permute.xlu0 %59
    %vm62 = vcmask 261120
    %v64 = vsel %vm62, %v34, 0
    %v67 = vsel %vm62, %v35, 0
    %v70 = vsel %vm62, %v36, 0
    %v73 = vsel %vm62, %v37, 0
    %v76 = vsel %vm62, %v26, 0
    %v79 = vsel %vm62, %v27, 0
    %v82 = vsel %vm62, %v28, 0
    %v85 = vsel %vm62, %v29, 0
    %v88 = vsel %vm62, %v30, 0
    %v91 = vsel %vm62, %v31, 0
    %v94 = vsel %vm62, %v32, 0
    %v97 = vsel %vm62, %v33, 0
    %99 = vmatprep.subr.mxu0 0.0
    %100 = vmatpush1.xpose.msra.mxu0 %v76
    %101 = vmatprep.subr.mxu0 0.0
    %102 = vmatpush1.xpose.msra.mxu0 %v79
    %103 = vmatprep.subr.mxu0 0.0
    %104 = vmatpush1.xpose.msra.mxu0 %v82
    %105 = vmatprep.subr.mxu0 0.0
    %106 = vmatpush1.xpose.msra.mxu0 %v85
    %107 = vmatprep.subr.mxu0 0.0
    %108 = vmatpush1.xpose.msra.mxu0 %v88
    %109 = vmatprep.subr.mxu0 0.0
    %110 = vmatpush1.xpose.msra.mxu0 %v91
    %111 = vmatprep.subr.mxu0 0.0
    %112 = vmatpush1.xpose.msra.mxu0 %v94
    %113 = vmatprep.subr.mxu0 0.0
    %114 = vmatpush1.xpose.msra.mxu0 %v97
    %115 = vmatprep.subr.mxu0 0.0
    %116 = vmatpush1.xpose.msra.mxu0 0.0
    %117 = vmatprep.subr.mxu0 0.0
    %118 = vmatpush1.xpose.msra.mxu0 0.0
    %119 = vmatprep.subr.mxu0 0.0
    %120 = vmatpush1.xpose.msra.mxu0 0.0
    %121 = vmatprep.subr.mxu0 0.0
    %122 = vmatpush1.xpose.msra.mxu0 0.0
    %123 = vmatprep.subr.mxu0 0.0
    %124 = vmatpush1.xpose.msra.mxu0 0.0
    %125 = vmatprep.subr.mxu0 0.0
    %126 = vmatpush1.xpose.msra.mxu0 0.0
    %127 = vmatprep.subr.mxu0 0.0
    %128 = vmatpush1.xpose.msra.mxu0 0.0
    %129 = vmatprep.subr.mxu0 0.0
    %130 = vmatpush1.xpose.msra.mxu0 0.0
    %131 = vmatprep.subr.mxu0 0.0
    %132 = vmatpush1.xpose.msra.mxu0 0.0
    %133 = vmatprep.subr.mxu0 0.0
    %134 = vmatpush1.xpose.msra.mxu0 0.0
    %135 = vmatprep.subr.mxu0 0.0
    %136 = vmatpush1.xpose.msra.mxu0 0.0
    %137 = vmatprep.subr.mxu0 0.0
    %138 = vmatpush1.xpose.msra.mxu0 0.0
    %139 = vmatprep.subr.mxu0 0.0
    %140 = vmatpush1.xpose.msra.mxu0 0.0
    %141 = vmatprep.subr.mxu0 0.0
    %142 = vmatpush1.xpose.msra.mxu0 0.0
    %143 = vmatprep.subr.mxu0 0.0
    %144 = vmatpush1.xpose.msra.mxu0 0.0
    %145 = vmatprep.subr.mxu0 0.0
    %146 = vmatpush1.xpose.msra.mxu0 0.0
    %147 = vmatprep.subr.mxu0 0.0
    %148 = vmatpush1.xpose.msra.mxu0 0.0
    %149 = vmatprep.subr.mxu0 0.0
    %150 = vmatpush1.xpose.msra.mxu0 0.0
    %151 = vmatprep.subr.mxu0 0.0
    %152 = vmatpush1.xpose.msra.mxu0 0.0
    %153 = vmatprep.subr.mxu0 0.0
    %154 = vmatpush1.xpose.msra.mxu0 0.0
    %155 = vmatprep.subr.mxu0 0.0
    %156 = vmatpush1.xpose.msra.mxu0 0.0
    %157 = vmatprep.subr.mxu0 0.0
    %158 = vmatpush1.xpose.msra.mxu0 0.0
    %159 = vmatprep.subr.mxu0 0.0
    %160 = vmatpush1.xpose.msra.mxu0 0.0
    %161 = vmatprep.subr.mxu0 0.0
    %162 = vmatpush1.xpose.msra.mxu0 0.0
    %163 = vmatprep.mubr.f32.mxu0 0.0
    %164 = vmatmul.mubr.f32.gmra.mrb[0].mxu0 %v64
    %v165 = vpop.f32.mrb[0].mxu0
    %v166 = vadd.f32 %v45, %v165
    %v167 = vpop.f32.mrb[0].mxu0
    %168 = vmatprep.mubr.f32.mxu0 0.0
    %169 = vmatmul.mubr.f32.gmra.mrb[0].mxu0 %v67
    %v170 = vpop.f32.mrb[0].mxu0
    %v171 = vadd.f32 %v50, %v170
    %v172 = vpop.f32.mrb[0].mxu0
    %173 = vmatprep.mubr.f32.mxu0 0.0
    %174 = vmatmul.mubr.f32.gmra.mrb[0].mxu0 %v70
    %v175 = vpop.f32.mrb[0].mxu0
    %v176 = vadd.f32 %v55, %v175
    %v177 = vpop.f32.mrb[0].mxu0
    %178 = vmatprep.mubr.f32.mxu0 0.0
    %179 = vmatmul.mubr.f32.gmra.mrb[0].mxu0 %v73
    %v180 = vpop.f32.mrb[0].mxu0
    %v181 = vadd.f32 %v60, %v180
    %v182 = vpop.f32.mrb[0].mxu0
    %183 = vdwg.mxu0
    %v184 = vmax.f32 %v166, 0.0
    %v185 = vmax.f32 %v171, 0.0
    %v186 = vmax.f32 %v176, 0.0
    %v187 = vmax.f32 %v181, 0.0
    %v188 = vld [vmem:[%s2] sm:$0xff]
    %v189 = vld [vmem:[%s2 + $0x8] sm:$0xff]
    %v190 = vld [vmem:[%s2 + $0x10] sm:$0xff]
    %v191 = vld [vmem:[%s2 + $0x18] sm:$0xff]
    %s192 = scalar_lea.vmem %s3, 32
    %v193 = vld [vmem:[%s192] sm:$0xff]
    %v194 = vld [vmem:[%s192 + $0x8] sm:$0xff]
    %v195 = vld [vmem:[%s192 + $0x10] sm:$0xff]
    %v196 = vld [vmem:[%s192 + $0x18] sm:$0xff]
    %198 = vset.pattern.permute.xlu0 0
    %199 = vperm.xlu0 %198, %v193
    %v200 = vpop.permute.xlu0 %199
    %203 = vset.pattern.permute.xlu0 0
    %204 = vperm.xlu0 %203, %v194
    %v205 = vpop.permute.xlu0 %204
    %208 = vset.pattern.permute.xlu0 0
    %209 = vperm.xlu0 %208, %v195
    %v210 = vpop.permute.xlu0 %209
    %213 = vset.pattern.permute.xlu0 0
    %214 = vperm.xlu0 %213, %v196
    %v215 = vpop.permute.xlu0 %214
    %v218 = vsel %vm62, %v188, 0
    %v221 = vsel %vm62, %v189, 0
    %v224 = vsel %vm62, %v190, 0
    %v227 = vsel %vm62, %v191, 0
    %229 = vmatprep.subr.mxu0 0.0
    %230 = vmatpush1.msra.mxu0 %v184
    %231 = vmatprep.subr.mxu0 0.0
    %232 = vmatpush1.msra.mxu0 %v185
    %233 = vmatprep.subr.mxu0 0.0
    %234 = vmatpush1.msra.mxu0 %v186
    %235 = vmatprep.subr.mxu0 0.0
    %236 = vmatpush1.msra.mxu0 %v187
    %237 = vmatprep.subr.mxu0 0.0
    %238 = vmatpush1.msra.mxu0 0.0
    %239 = vmatprep.subr.mxu0 0.0
    %240 = vmatpush1.msra.mxu0 0.0
    %241 = vmatprep.subr.mxu0 0.0
    %242 = vmatpush1.msra.mxu0 0.0
    %243 = vmatprep.subr.mxu0 0.0
    %244 = vmatpush1.msra.mxu0 0.0
    %245 = vmatprep.subr.mxu0 0.0
    %246 = vmatpush1.msra.mxu0 0.0
    %247 = vmatprep.subr.mxu0 0.0
    %248 = vmatpush1.msra.mxu0 0.0
    %249 = vmatprep.subr.mxu0 0.0
    %250 = vmatpush1.msra.mxu0 0.0
    %251 = vmatprep.subr.mxu0 0.0
    %252 = vmatpush1.msra.mxu0 0.0
    %253 = vmatprep.subr.mxu0 0.0
    %254 = vmatpush1.msra.mxu0 0.0
    %255 = vmatprep.subr.mxu0 0.0
    %256 = vmatpush1.msra.mxu0 0.0
    %257 = vmatprep.subr.mxu0 0.0
    %258 = vmatpush1.msra.mxu0 0.0
    %259 = vmatprep.subr.mxu0 0.0
    %260 = vmatpush1.msra.mxu0 0.0
    %261 = vmatprep.subr.mxu0 0.0
    %262 = vmatpush1.msra.mxu0 0.0
    %263 = vmatprep.subr.mxu0 0.0
    %264 = vmatpush1.msra.mxu0 0.0
    %265 = vmatprep.subr.mxu0 0.0
    %266 = vmatpush1.msra.mxu0 0.0
    %267 = vmatprep.subr.mxu0 0.0
    %268 = vmatpush1.msra.mxu0 0.0
    %269 = vmatprep.subr.mxu0 0.0
    %270 = vmatpush1.msra.mxu0 0.0
    %271 = vmatprep.subr.mxu0 0.0
    %272 = vmatpush1.msra.mxu0 0.0
    %273 = vmatprep.subr.mxu0 0.0
    %274 = vmatpush1.msra.mxu0 0.0
    %275 = vmatprep.subr.mxu0 0.0
    %276 = vmatpush1.msra.mxu0 0.0
    %277 = vmatprep.subr.mxu0 0.0
    %278 = vmatpush1.msra.mxu0 0.0
    %279 = vmatprep.subr.mxu0 0.0
    %280 = vmatpush1.msra.mxu0 0.0
    %281 = vmatprep.subr.mxu0 0.0
    %282 = vmatpush1.msra.mxu0 0.0
    %283 = vmatprep.subr.mxu0 0.0
    %284 = vmatpush1.msra.mxu0 0.0
    %285 = vmatprep.subr.mxu0 0.0
    %286 = vmatpush1.msra.mxu0 0.0
    %287 = vmatprep.subr.mxu0 0.0
    %288 = vmatpush1.msra.mxu0 0.0
    %289 = vmatprep.subr.mxu0 0.0
    %290 = vmatpush1.msra.mxu0 0.0
    %291 = vmatprep.subr.mxu0 0.0
    %292 = vmatpush1.msra.mxu0 0.0
    %293 = vmatprep.mubr.f32.mxu0 0.0
    %294 = vmatmul.mubr.f32.gmra.mrb[0].mxu0 %v218
    %v295 = vpop.f32.mrb[0].mxu0
    %v296 = vadd.f32 %v200, %v295
    %v297 = vpop.f32.mrb[0].mxu0
    %298 = vmatprep.mubr.f32.mxu0 0.0
    %299 = vmatmul.mubr.f32.gmra.mrb[0].mxu0 %v221
    %v300 = vpop.f32.mrb[0].mxu0
    %v301 = vadd.f32 %v205, %v300
    %v302 = vpop.f32.mrb[0].mxu0
    %303 = vmatprep.mubr.f32.mxu0 0.0
    %304 = vmatmul.mubr.f32.gmra.mrb[0].mxu0 %v224
    %v305 = vpop.f32.mrb[0].mxu0
    %v306 = vadd.f32 %v210, %v305
    %v307 = vpop.f32.mrb[0].mxu0
    %308 = vmatprep.mubr.f32.mxu0 0.0
    %309 = vmatmul.mubr.f32.gmra.mrb[0].mxu0 %v227
    %v310 = vpop.f32.mrb[0].mxu0
    %v311 = vadd.f32 %v215, %v310
    %v312 = vpop.f32.mrb[0].mxu0
    %313 = vdwg.mxu0
    %v314 = vmax.f32 %v296, 0.0
    %v315 = vmax.f32 %v301, 0.0
    %v316 = vmax.f32 %v306, 0.0
    %v317 = vmax.f32 %v311, 0.0
    %v318 = vld [vmem:[%s4] sm:$0xff]
    %v319 = vld [vmem:[%s4 + $0x8] sm:$0xff]
    %v320 = vld [vmem:[%s4 + $0x10] sm:$0xff]
    %v321 = vld [vmem:[%s4 + $0x18] sm:$0xff]
    %323 = vset.pattern.permute.xlu0 0
    %324 = vperm.xlu0 %323, %v318
    %v325 = vpop.permute.xlu0 %324
    %328 = vset.pattern.permute.xlu0 0
    %329 = vperm.xlu0 %328, %v319
    %v330 = vpop.permute.xlu0 %329
    %333 = vset.pattern.permute.xlu0 0
    %334 = vperm.xlu0 %333, %v320
    %v335 = vpop.permute.xlu0 %334
    %338 = vset.pattern.permute.xlu0 0
    %339 = vperm.xlu0 %338, %v321
    %v340 = vpop.permute.xlu0 %339
    %v342 = vmul.f32 %v314, %v325
    %v343 = vmul.f32 %v315, %v330
    %v344 = vmul.f32 %v316, %v335
    %v345 = vmul.f32 %v317, %v340
    %vm346 = vcmask 523264
    %v347 = vsel %vm346, %v342, 0.0
    %v348 = vsel %vm346, %v343, 0.0
    %v349 = vadd.f32 %v347, %v348
    %v350 = vsel %vm346, %v344, 0.0
    %v351 = vadd.f32 %v349, %v350
    %v352 = vsel %vm346, %v345, 0.0
    %v353 = vadd.f32 %v351, %v352
    %v354 = vrot.slane %v353, 4
    %v355 = vadd.f32 %v353, %v354
    %v356 = vrot.slane %v355, 2
    %v357 = vadd.f32 %v355, %v356
    %v358 = vrot.slane %v357, 1
    %v359 = vadd.f32 %v357, %v358
    %v360 = vld [vmem:[#allocation2] sm:$0x1]
    %362 = vset.pattern.permute.xlu0 0
    %363 = vperm.xlu0 %362, %v360
    %v364 = vpop.permute.xlu0 %363
    %v366 = vlaneseq
    %v367 = vshrl.u32 %v366, 7
    %v368 = vsub.s32 0, %v367
    %v369 = vrot.slane %v364, %v368
    %v370 = vadd.f32 %v359, %v369
    %vm371 = vcmask 516096
    %372 = vst.msk [vmem:[#allocation3] sm:$0x1] %vm371, %v370
    // Predicated region
    $region26: #{tpu_custom_call.1} parent=1 // pred_check
      _
    $region27: #{tpu_custom_call.1} parent=1 // pred_check_branch
      %374 = sbr.rel (0) target = $region29
    $region28: #{tpu_custom_call.1} parent=1 // pred_region
      %s376 = ssub.s32 16, 16
      %377 = vsyncadd [#allocation4], %s376
      %s379 = sshll.u32 [#allocation3], 4
      %s380 = int_to_ptr.vmem [resolvable:$true] %s379
      %382 = dma.vmem_to_hbm [thread:$0]  %s380, 16, %s6, [#allocation4]
    $region29: #{tpu_custom_call.1} parent=1 // pred_fallthru
      _
    // Predicated region
    $region30: #{tpu_custom_call.1} parent=1 // pred_check
      _
    $region31: #{tpu_custom_call.1} parent=1 // pred_check_branch
      %384 = sbr.rel (0) target = $region33
    $region32: #{tpu_custom_call.1} parent=1 // pred_region
      %385 = dma.done [#allocation4], 16
    $region33: #{tpu_custom_call.1} parent=1 // pred_fallthru
      _
    %386 = vsyncpa [#allocation4], 1

</llo_original>
